<compile_context>
chip_gen: v7x
topology: tpu7x:2x2x1
jax: 0.10.0
libtpu: 0.0.40
codegen_flags: <defaults>
</compile_context>

<pallas_src>
import functools

import jax
import jax.numpy as jnp
from jax.experimental import pallas as pl
from jax.experimental.pallas import tpu as pltpu


# ---------------------------------------------------------------------------
# Kernel helpers
# ---------------------------------------------------------------------------
def _valid_rows_mask(tn, n_total):
    """(tn, 1) mask of rows that are real (not tail padding of the last tile)."""
    row = jax.lax.broadcasted_iota(jnp.int32, (tn, 1), 0)
    return (pl.program_id(0) * tn + row) < n_total


def _write_partials(out_ref, kl_partial, ce_partial):
    """Write two scalar partial sums into a lane-dense (1, 2, 128) f32 block:
       sublane 0 -> KL partial, sublane 1 -> CE partial."""
    row = jax.lax.broadcasted_iota(jnp.int32, (2, 128), 0)
    out_ref[0] = jnp.where(row == 0, kl_partial, ce_partial)


def _int_pow(y, k):
    """y**k for a small static positive integer k (binary exponentiation, VPU)."""
    acc = None
    base = y
    while k:
        if k & 1:
            acc = base if acc is None else acc * base
        k >>= 1
        if k:
            base = base * base
    return acc


# ---------------------------------------------------------------------------
# Kernels
# ---------------------------------------------------------------------------
def _soft_hard_kernel(x_ref, t_ref, lbl_ref, out_ref, *, temperature, n_total):
    """Per-tile partial sums of:
       KL term  sum_rows sum_c p_t * (log p_t - p_s)   (bug-compatible: p_s, not log p_s)
       CE term  sum_rows (lse(x) - x[label])
    """
    inv_t = jnp.float32(1.0 / temperature)
    xs = x_ref[...].astype(jnp.float32) * inv_t      # (tn, C) student logits / T
    ts = t_ref[...].astype(jnp.float32) * inv_t      # (tn, C) teacher logits / T
    lbl = lbl_ref[...]                               # (tn, 1) int32
    tn, c = xs.shape

    xs_max = jnp.max(xs, axis=1, keepdims=True)
    ts_max = jnp.max(ts, axis=1, keepdims=True)
    ex = jnp.exp(xs - xs_max)
    et = jnp.exp(ts - ts_max)
    sum_ex = jnp.sum(ex, axis=1, keepdims=True)
    sum_et = jnp.sum(et, axis=1, keepdims=True)

    # ---- soft target loss, algebraically fused, exact divides ----
    # sum_c p_t*(log p_t - p_s) = (s1 - s2/sum_ex)/sum_et - log(sum_et)
    #   with s1 = sum_c et*(ts - ts_max),  s2 = sum_c et*ex
    s1 = jnp.sum(et * (ts - ts_max), axis=1, keepdims=True)
    s2 = jnp.sum(et * ex, axis=1, keepdims=True)
    kl_rows = (s1 - s2 / sum_ex) / sum_et - jnp.log(sum_et)          # (tn, 1)

    # ---- hard target loss (CE at temperature 1), derived from xs only ----
    # x - x_max = T*(xs - xs_max)  =>  exp(x - x_max) = ex**T  (integer T);
    # no second f32 copy of the logits, no third full-tile exp.
    t_f = jnp.float32(temperature)
    t_int = int(round(float(temperature)))
    if abs(float(temperature) - t_int) < 1e-12 and 1 <= t_int <= 16:
        exp_x = _int_pow(ex, t_int)
    else:
        exp_x = jnp.exp((xs - xs_max) * t_f)
    lse_x = t_f * xs_max + jnp.log(jnp.sum(exp_x, axis=1, keepdims=True))
    class_iota = jax.lax.broadcasted_iota(jnp.int32, (tn, c), 1)
    picked_xs = jnp.sum(jnp.where(class_iota == lbl, xs, 0.0),
                        axis=1, keepdims=True)
    ce_rows = lse_x - t_f * picked_xs                                # (tn, 1)

    # ---- mask tail-padding rows and reduce to per-tile scalars ----
    valid = _valid_rows_mask(tn, n_total)
    kl_partial = jnp.sum(jnp.where(valid, kl_rows, 0.0))
    ce_partial = jnp.sum(jnp.where(valid, ce_rows, 0.0))
    _write_partials(out_ref, kl_partial, ce_partial)


def _hard_kernel(x_ref, lbl_ref, out_ref, *, n_total):
    """Hard-loss-only variant (no teacher stream, no soft-loss compute)."""
    x = x_ref[...].astype(jnp.float32)
    lbl = lbl_ref[...]
    tn, c = x.shape
    x_max = jnp.max(x, axis=1, keepdims=True)
    lse = jnp.log(jnp.sum(jnp.exp(x - x_max), axis=1, keepdims=True)) + x_max
    class_iota = jax.lax.broadcasted_iota(jnp.int32, (tn, c), 1)
    picked = jnp.sum(jnp.where(class_iota == lbl, x, 0.0), axis=1, keepdims=True)
    ce_rows = lse - picked
    valid = _valid_rows_mask(tn, n_total)
    ce_partial = jnp.sum(jnp.where(valid, ce_rows, 0.0))
    _write_partials(out_ref, jnp.float32(0.0), ce_partial)


# ---------------------------------------------------------------------------
# Wrapper
# ---------------------------------------------------------------------------
def _vmem_capacity_bytes():
    try:
        return int(pltpu.get_tpu_info().vmem_capacity_bytes)
    except Exception:
        return 64 * 1024 * 1024   # conservative fallback = v7x per-core VMEM


def _choose_tile_n(n, c, itemsize, n_streams, vmem_cap):
    """Pick the batch tile from the *total* per-step VMEM footprint:
         streamed inputs (double-buffered): n_streams * 2 * tile_n * C * itemsize
         live f32 temporaries in the body : ~8 * tile_n * C * 4
       targeting ~4 MiB of streamed bytes per (stream, buffer) so the ~0.35us
       per-grid-step overhead is <~5% of each step's DMA time."""
    budget = vmem_cap // 2                      # leave half for scratch/headroom
    per_row = c * (n_streams * 2 * itemsize + 8 * 4)
    tile_vmem = budget // max(1, per_row)
    tile_stream = (4 * 1024 * 1024) // max(1, c * itemsize)
    tile = max(16, min(tile_vmem, tile_stream))
    tile = max(16, (tile // 16) * 16)           # bf16 packs 16 rows / vreg
    if n <= tile:
        return n                                # single block = full batch dim
    return tile
    # TODO(synk): for vocab-scale C (>= ~16K classes) add a second, "arbitrary"
    # grid axis over C with online-softmax scratch so tile_n stays large and
    # VMEM stays bounded independently of C (mandatory on v7x's 64 MiB VMEM).


def distill_loss(outputs, labels, outputs_teacher, *, temperature,
                 distillation_weight, tile_n=None):
    """JAX/Pallas equivalent of DistillLoss.forward.

    outputs:         (N, C) float logits (student), any float dtype (streamed native)
    labels:          (N,)   integer class indices
    outputs_teacher: (N, C) float logits (teacher) or None
    Returns (soft_target_loss, hard_target_loss, total_loss) scalars (f32).
    """
    n, c = outputs.shape
    labels2d = labels.astype(jnp.int32).reshape(n, 1)
    use_teacher = (outputs_teacher is not None) and (distillation_weight > 0)
    n_streams = 2 if use_teacher else 1

    itemsize = jnp.dtype(outputs.dtype).itemsize
    vmem_cap = _vmem_capacity_bytes()
    if tile_n is None:
        tile_n = _choose_tile_n(n, c, itemsize, n_streams, vmem_cap)
    num_tiles = pl.cdiv(n, tile_n)

    logits_spec = pl.BlockSpec((tile_n, c), lambda i: (i, 0))
    # TODO(synk): labels ride as a (tile_n, 1) int32 block (strided 4B/sublane-row
    # DMA on the VMEM side).  A lane-dense (num_tiles, tile_n) layout would need
    # an in-kernel lane->sublane relayout of the label vector; kept simple and
    # portable here since the label bytes are <1% of the streamed logits.
    labels_spec = pl.BlockSpec((tile_n, 1), lambda i: (i, 0))
    out_spec = pl.BlockSpec((1, 2, 128), lambda i: (i, 0, 0))
    out_shape = jax.ShapeDtypeStruct((num_tiles, 2, 128), jnp.float32)

    cost = pl.CostEstimate(
        flops=int(12 * n * c),
        transcendentals=int((2 if use_teacher else 1) * n * c),
        bytes_accessed=int(n_streams * n * c * itemsize + n * 4
                           + num_tiles * 2 * 128 * 4),
    )
    cparams = pltpu.CompilerParams(
        dimension_semantics=("parallel",),     # per-tile partials -> both TCs on v7x
        vmem_limit_bytes=int(min(vmem_cap - 16 * 1024 * 1024, 96 * 1024 * 1024)),
    )

    if use_teacher:
        kernel = functools.partial(
            _soft_hard_kernel, temperature=float(temperature), n_total=n)
        partials = pl.pallas_call(
            kernel,
            grid=(num_tiles,),
            in_specs=[logits_spec, logits_spec, labels_spec],
            out_specs=out_spec,
            out_shape=out_shape,
            compiler_params=cparams,
            cost_estimate=cost,
        )(outputs, outputs_teacher, labels2d)
        kl_sum = jnp.sum(partials[:, 0, 0])
        soft = (kl_sum / jnp.float32(n)) * jnp.float32(temperature) ** 2
    else:
        kernel = functools.partial(_hard_kernel, n_total=n)
        partials = pl.pallas_call(
            kernel,
            grid=(num_tiles,),
            in_specs=[logits_spec, labels_spec],
            out_specs=out_spec,
            out_shape=out_shape,
            compiler_params=cparams,
            cost_estimate=cost,
        )(outputs, labels2d)
        soft = jnp.float32(0.0)

    hard = jnp.sum(partials[:, 1, 0]) / jnp.float32(n)
    w = jnp.float32(distillation_weight)
    total = soft * w + hard * (jnp.float32(1.0) - w)
    return soft, hard, total


# ---------------------------------------------------------------------------
# Pure-JAX reference (matches the PyTorch module semantics)
# ---------------------------------------------------------------------------
def _reference(outputs, labels, outputs_teacher, temperature, distillation_weight):
    outputs = outputs.astype(jnp.float32)
    soft = jnp.float32(0.0)
    if outputs_teacher is not None and distillation_weight > 0:
        outputs_teacher = outputs_teacher.astype(jnp.float32)
        p_s = jax.nn.softmax(outputs / temperature, axis=1)
        p_t = jax.nn.softmax(outputs_teacher / temperature, axis=1)
        # nn.KLDivLoss(reduction='batchmean'): sum(target*(log(target)-input)) / N
        kl = jnp.sum(p_t * (jnp.log(p_t) - p_s)) / outputs.shape[0]
        soft = kl * temperature ** 2
    logp = jax.nn.log_softmax(outputs, axis=1)
    hard = -jnp.mean(jnp.take_along_axis(logp, labels[:, None], axis=1))
    total = soft * distillation_weight + hard * (1 - distillation_weight)
    return soft, hard, total


def _check(got, ref, name, tol=1e-3):
    for g, r, tag in zip(got, ref, ("soft", "hard", "total")):
        assert jnp.allclose(g, r, atol=tol, rtol=tol), (name, tag, g, r)


if __name__ == "__main__":
    key = jax.random.PRNGKey(0)
    k1, k2, k3, k4, k5, k6 = jax.random.split(key, 6)

    temperature = 4.0
    distillation_weight = 0.5

    # --- Test A: teacher present, single block (default tile) --------------
    N, C = 24, 128
    outputs = jax.random.normal(k1, (N, C), dtype=jnp.float32) * 2.0
    teacher = jax.random.normal(k2, (N, C), dtype=jnp.float32) * 2.0
    labels = jax.random.randint(k3, (N,), 0, C, dtype=jnp.int32)

    got = distill_loss(outputs, labels, teacher,
                       temperature=temperature,
                       distillation_weight=distillation_weight)
    jax.block_until_ready(got[2])
    _check(got, _reference(outputs, labels, teacher, temperature,
                           distillation_weight), "A")

    # --- Test B: forced small tile with a partial tail block (masking path) -
    N2 = 20
    outputs2 = jax.random.normal(k4, (N2, C), dtype=jnp.float32) * 2.0
    teacher2 = jax.random.normal(k5, (N2, C), dtype=jnp.float32) * 2.0
    labels2 = jax.random.randint(k6, (N2,), 0, C, dtype=jnp.int32)

    got2 = distill_loss(outputs2, labels2, teacher2,
                        temperature=temperature,
                        distillation_weight=distillation_weight,
                        tile_n=8)  # grid of 3 tiles, last tile partially valid
    jax.block_until_ready(got2[2])
    _check(got2, _reference(outputs2, labels2, teacher2, temperature,
                            distillation_weight), "B")

    # --- Test C: no teacher -> hard-loss-only kernel ------------------------
    got3 = distill_loss(outputs, labels, None,
                        temperature=temperature,
                        distillation_weight=distillation_weight)
    jax.block_until_ready(got3[2])
    _check(got3, _reference(outputs, labels, None, temperature,
                            distillation_weight), "C")

    # --- Test D: native bf16 streaming (no host-side f32 upcast) ------------
    got4 = distill_loss(outputs.astype(jnp.bfloat16), labels,
                        teacher.astype(jnp.bfloat16),
                        temperature=temperature,
                        distillation_weight=distillation_weight)
    jax.block_until_ready(got4[2])
    _check(got4, _reference(outputs.astype(jnp.bfloat16), labels,
                            teacher.astype(jnp.bfloat16), temperature,
                            distillation_weight), "D")

    print("KERNEL_OK")
</pallas_src>

<mosaic_0001>
module attributes {stable_mosaic.version = 11 : i64} {
  func.func @_soft_hard_kernel(%arg0: i32, %arg1: memref<24x128xf32, #tpu.memory_space<vmem>>, %arg2: memref<24x128xf32, #tpu.memory_space<vmem>>, %arg3: memref<24x1xi32, #tpu.memory_space<vmem>>, %arg4: memref<1x2x128xf32, #tpu.memory_space<vmem>>) attributes {dimension_semantics = [#tpu.dimension_semantics<parallel>], iteration_bounds = array<i64: 1>, scalar_prefetch = 0 : i64, scratch_operands = 0 : i64, tpu.core_type = #tpu.core_type<tc>, window_params = [{transform_indices = @transform_0, window_bounds = array<i64: 24, 128>}, {transform_indices = @transform_1, window_bounds = array<i64: 24, 128>}, {transform_indices = @transform_2, window_bounds = array<i64: 24, 1>}, {transform_indices = @transform_3, window_bounds = array<i64: 1, 2, 128>}]} {
    %c0 = arith.constant 0 : index
    %c0_0 = arith.constant 0 : index
    %0 = vector.load %arg1[%c0, %c0_0] : memref<24x128xf32, #tpu.memory_space<vmem>>, vector<24x128xf32>
    %cst = arith.constant 2.500000e-01 : f32
    %1 = vector.broadcast %cst : f32 to vector<24x128xf32>
    %2 = arith.mulf %0, %1 : vector<24x128xf32>
    %c0_1 = arith.constant 0 : index
    %c0_2 = arith.constant 0 : index
    %3 = vector.load %arg2[%c0_1, %c0_2] : memref<24x128xf32, #tpu.memory_space<vmem>>, vector<24x128xf32>
    %cst_3 = arith.constant 2.500000e-01 : f32
    %4 = vector.broadcast %cst_3 : f32 to vector<24x128xf32>
    %5 = arith.mulf %3, %4 : vector<24x128xf32>
    %c0_4 = arith.constant 0 : index
    %c0_5 = arith.constant 0 : index
    %6 = vector.load %arg3[%c0_4, %c0_5] : memref<24x1xi32, #tpu.memory_space<vmem>>, vector<24x1xi32>
    %cst_6 = arith.constant dense<0xFF800000> : vector<24xf32>
    %7 = vector.multi_reduction <maximumf>, %2, %cst_6 [1] : vector<24x128xf32> to vector<24xf32>
    %8 = vector.shape_cast %7 : vector<24xf32> to vector<24x1xf32>
    %cst_7 = arith.constant dense<0xFF800000> : vector<24xf32>
    %9 = vector.multi_reduction <maximumf>, %5, %cst_7 [1] : vector<24x128xf32> to vector<24xf32>
    %10 = vector.shape_cast %9 : vector<24xf32> to vector<24x1xf32>
    %11 = vector.broadcast %8 : vector<24x1xf32> to vector<24x128xf32>
    %12 = arith.subf %2, %11 : vector<24x128xf32>
    %13 = math.exp %12 : vector<24x128xf32>
    %14 = vector.broadcast %10 : vector<24x1xf32> to vector<24x128xf32>
    %15 = arith.subf %5, %14 : vector<24x128xf32>
    %16 = math.exp %15 : vector<24x128xf32>
    %cst_8 = arith.constant dense<0.000000e+00> : vector<24xf32>
    %17 = vector.multi_reduction <add>, %13, %cst_8 [1] : vector<24x128xf32> to vector<24xf32>
    %18 = vector.shape_cast %17 : vector<24xf32> to vector<24x1xf32>
    %cst_9 = arith.constant dense<0.000000e+00> : vector<24xf32>
    %19 = vector.multi_reduction <add>, %16, %cst_9 [1] : vector<24x128xf32> to vector<24xf32>
    %20 = vector.shape_cast %19 : vector<24xf32> to vector<24x1xf32>
    %21 = vector.broadcast %10 : vector<24x1xf32> to vector<24x128xf32>
    %22 = arith.subf %5, %21 : vector<24x128xf32>
    %23 = arith.mulf %16, %22 : vector<24x128xf32>
    %cst_10 = arith.constant dense<0.000000e+00> : vector<24xf32>
    %24 = vector.multi_reduction <add>, %23, %cst_10 [1] : vector<24x128xf32> to vector<24xf32>
    %25 = vector.shape_cast %24 : vector<24xf32> to vector<24x1xf32>
    %26 = arith.mulf %16, %13 : vector<24x128xf32>
    %cst_11 = arith.constant dense<0.000000e+00> : vector<24xf32>
    %27 = vector.multi_reduction <add>, %26, %cst_11 [1] : vector<24x128xf32> to vector<24xf32>
    %28 = vector.shape_cast %27 : vector<24xf32> to vector<24x1xf32>
    %29 = arith.divf %28, %18 : vector<24x1xf32>
    %30 = arith.subf %25, %29 : vector<24x1xf32>
    %31 = arith.divf %30, %20 : vector<24x1xf32>
    %32 = math.log %20 : vector<24x1xf32>
    %33 = arith.subf %31, %32 : vector<24x1xf32>
    %34 = arith.mulf %13, %13 : vector<24x128xf32>
    %35 = arith.mulf %34, %34 : vector<24x128xf32>
    %cst_12 = arith.constant 4.000000e+00 : f32
    %36 = vector.broadcast %cst_12 : f32 to vector<24x1xf32>
    %37 = arith.mulf %36, %8 : vector<24x1xf32>
    %cst_13 = arith.constant dense<0.000000e+00> : vector<24xf32>
    %38 = vector.multi_reduction <add>, %35, %cst_13 [1] : vector<24x128xf32> to vector<24xf32>
    %39 = vector.shape_cast %38 : vector<24xf32> to vector<24x1xf32>
    %40 = math.log %39 : vector<24x1xf32>
    %41 = arith.addf %37, %40 : vector<24x1xf32>
    %42 = tpu.iota {dimensions = array<i32: 1>} : vector<24x128xi32>
    %43 = vector.broadcast %6 : vector<24x1xi32> to vector<24x128xi32>
    %44 = arith.cmpi eq, %42, %43 : vector<24x128xi32>
    %cst_14 = arith.constant 0.000000e+00 : f32
    %45 = vector.broadcast %cst_14 : f32 to vector<24x128xf32>
    %46 = arith.select %44, %2, %45 : vector<24x128xi1>, vector<24x128xf32>
    %cst_15 = arith.constant dense<0.000000e+00> : vector<24xf32>
    %47 = vector.multi_reduction <add>, %46, %cst_15 [1] : vector<24x128xf32> to vector<24xf32>
    %48 = vector.shape_cast %47 : vector<24xf32> to vector<24x1xf32>
    %cst_16 = arith.constant 4.000000e+00 : f32
    %49 = vector.broadcast %cst_16 : f32 to vector<24x1xf32>
    %50 = arith.mulf %49, %48 : vector<24x1xf32>
    %51 = arith.subf %41, %50 : vector<24x1xf32>
    %52 = tpu.iota {dimensions = array<i32: 0>} : vector<24x1xi32>
    %c24_i32 = arith.constant 24 : i32
    %53 = arith.muli %arg0, %c24_i32 : i32
    %54 = vector.broadcast %53 : i32 to vector<24x1xi32>
    %55 = arith.addi %54, %52 : vector<24x1xi32>
    %c24_i32_17 = arith.constant 24 : i32
    %56 = vector.broadcast %c24_i32_17 : i32 to vector<24x1xi32>
    %57 = arith.cmpi slt, %55, %56 : vector<24x1xi32>
    %cst_18 = arith.constant 0.000000e+00 : f32
    %58 = vector.broadcast %cst_18 : f32 to vector<24x1xf32>
    %59 = arith.select %57, %33, %58 : vector<24x1xi1>, vector<24x1xf32>
    %60 = vector.shape_cast %59 : vector<24x1xf32> to vector<1x24x1xf32>
    %cst_19 = arith.constant dense<0.000000e+00> : vector<1xf32>
    %61 = vector.multi_reduction <add>, %60, %cst_19 [1, 2] : vector<1x24x1xf32> to vector<1xf32>
    %62 = vector.shape_cast %61 : vector<1xf32> to vector<1x1x1xf32>
    %63 = vector.extract %62[0, 0, 0] : f32 from vector<1x1x1xf32>
    %cst_20 = arith.constant 0.000000e+00 : f32
    %64 = vector.broadcast %cst_20 : f32 to vector<24x1xf32>
    %65 = arith.select %57, %51, %64 : vector<24x1xi1>, vector<24x1xf32>
    %66 = vector.shape_cast %65 : vector<24x1xf32> to vector<1x24x1xf32>
    %cst_21 = arith.constant dense<0.000000e+00> : vector<1xf32>
    %67 = vector.multi_reduction <add>, %66, %cst_21 [1, 2] : vector<1x24x1xf32> to vector<1xf32>
    %68 = vector.shape_cast %67 : vector<1xf32> to vector<1x1x1xf32>
    %69 = vector.extract %68[0, 0, 0] : f32 from vector<1x1x1xf32>
    %70 = tpu.iota {dimensions = array<i32: 0>} : vector<2x128xi32>
    %c0_i32 = arith.constant 0 : i32
    %71 = vector.broadcast %c0_i32 : i32 to vector<2x128xi32>
    %72 = arith.cmpi eq, %70, %71 : vector<2x128xi32>
    %73 = vector.broadcast %63 : f32 to vector<2x128xf32>
    %74 = vector.broadcast %69 : f32 to vector<2x128xf32>
    %75 = arith.select %72, %73, %74 : vector<2x128xi1>, vector<2x128xf32>
    %c0_22 = arith.constant 0 : index
    %c0_23 = arith.constant 0 : index
    %c0_24 = arith.constant 0 : index
    %76 = vector.load %arg4[%c0_22, %c0_23, %c0_24] : memref<1x2x128xf32, #tpu.memory_space<vmem>>, vector<1x2x128xf32>
    %77 = vector.shape_cast %76 : vector<1x2x128xf32> to vector<2x128xf32>
    %78 = vector.shape_cast %75 : vector<2x128xf32> to vector<1x2x128xf32>
    tpu.vector_store %arg4[%c0_22, %c0_23, %c0_24], %78 {strides = array<i32>} : memref<1x2x128xf32, #tpu.memory_space<vmem>>, vector<1x2x128xf32>,
    return
  }
  func.func @transform_0(%arg0: i32) -> (i32, i32) {
    %c0_i32 = arith.constant 0 : i32
    %c0_i32_0 = arith.constant 0 : i32
    return %arg0, %c0_i32 : i32, i32
  }
  func.func @transform_1(%arg0: i32) -> (i32, i32) {
    %c0_i32 = arith.constant 0 : i32
    %c0_i32_0 = arith.constant 0 : i32
    return %arg0, %c0_i32 : i32, i32
  }
  func.func @transform_2(%arg0: i32) -> (i32, i32) {
    %c0_i32 = arith.constant 0 : i32
    %c0_i32_0 = arith.constant 0 : i32
    return %arg0, %c0_i32 : i32, i32
  }
  func.func @transform_3(%arg0: i32) -> (i32, i32, i32) {
    %c0_i32 = arith.constant 0 : i32
    %c0_i32_0 = arith.constant 0 : i32
    %c0_i32_1 = arith.constant 0 : i32
    return %arg0, %c0_i32, %c0_i32_0 : i32, i32, i32
  }
}

</mosaic_0001>

<llo_original>
// kernel: tpu_custom_call.1
$region0: #{tpu_custom_call.1}
  #allocation0 [shape = 'u32[]', space=smem, size = 0x4, offset = 0x4, fixed_abs, tag = 'smem constant byte address 0x4 - core index']
  #allocation1 [shape = 'u32[144,128]{1,0:T(1,128)}', space=vmem, size = 0x12000, scoped, tag = 'internal scratch']
  %s0 = inlined_call_operand.vmem [shape: f32[24,128], index: 0, kind: input, shape index: {}]
  %s1 = inlined_call_operand.hbm [shape: f32[24,128], index: 1, kind: input, shape index: {}]
  %s2 = inlined_call_operand.vmem [shape: s32[24,1], index: 2, kind: input, shape index: {}]
  %s3 = inlined_call_operand.hbm [shape: f32[1,2,128], index: 3, kind: output, shape index: {}]
  %s4 = sld [smem:[#allocation0]]
  $region26: #{tpu_custom_call.1} parent=0
    _
  %s6 = ssub.s32 1, %s4
  %s7 = scalar_select 0, %s6, %s4
  $region1: #{tpu_custom_call.1} parent=0
    #allocation2 [shape = 'u8[12288]{0}', space=vmem, size = 0x3000, scoped, tag = 'input window, operand 1, single buffered']
    #allocation3 [shape = 's32[1]{0}', space=sflag, size = 0x4, scoped, tag = 'scoped memory for tpu_custom_call.1']
    #allocation4 [shape = 's32[1]{0}', space=sflag, size = 0x4, scoped, tag = 'scoped memory for tpu_custom_call.1']
    #allocation5 [shape = 'u8[1024]{0}', space=vmem, size = 0x400, scoped, tag = 'output window, operand 0, single buffered']
    %8 = vsyncpa [#allocation3], 0
    %9 = vsyncpa [#allocation4], 0
    // Predicated region
    $region2: #{tpu_custom_call.1} parent=1 // pred_check
      _
    $region3: #{tpu_custom_call.1} parent=1 // pred_check_branch
      %11 = sbr.rel (0) target = $region5
    $region4: #{tpu_custom_call.1} parent=1 // pred_region
      _
    $region5: #{tpu_custom_call.1} parent=1 // pred_fallthru
      _
    // Predicated region
    $region6: #{tpu_custom_call.1} parent=1 // pred_check
      _
    $region7: #{tpu_custom_call.1} parent=1 // pred_check_branch
      %13 = sbr.rel (0) target = $region9
    $region8: #{tpu_custom_call.1} parent=1 // pred_region
      %s15 = ssub.s32 384, 384
      %16 = vsyncadd [#allocation3], %s15
      %s17 = sshll.u32 [#allocation2], 4
      %s18 = int_to_ptr.vmem [resolvable:$true] %s17
      %23 = dma.hbm_to_vmem [thread:$0]  %s1, 384, %s18, [#allocation3], 128, 128, 8
    $region9: #{tpu_custom_call.1} parent=1 // pred_fallthru
      _
    // Predicated region
    $region10: #{tpu_custom_call.1} parent=1 // pred_check
      _
    $region11: #{tpu_custom_call.1} parent=1 // pred_check_branch
      %25 = sbr.rel (0) target = $region13
    $region12: #{tpu_custom_call.1} parent=1 // pred_region
      _
    $region13: #{tpu_custom_call.1} parent=1 // pred_fallthru
      _
    // Predicated region
    $region14: #{tpu_custom_call.1} parent=1 // pred_check
      _
    $region15: #{tpu_custom_call.1} parent=1 // pred_check_branch
      %27 = sbr.rel (0) target = $region17
    $region16: #{tpu_custom_call.1} parent=1 // pred_region
      %28 = dma.done [#allocation3], 384
    $region17: #{tpu_custom_call.1} parent=1 // pred_fallthru
      _
    %v29 = vld [vmem:[%s0] sm:$0xff]
    %v30 = vld [vmem:[%s0 + $0x8] sm:$0xff]
    %v31 = vld [vmem:[%s0 + $0x10] sm:$0xff]
    %v32 = vmul.f32 %v29, 0.25
    %v33 = vmul.f32 %v30, 0.25
    %v34 = vmul.f32 %v31, 0.25
    %v35 = vld [vmem:[#allocation2] sm:$0xff]
    %v36 = vld [vmem:[#allocation2 + $0x8] sm:$0xff]
    %v37 = vld [vmem:[#allocation2 + $0x10] sm:$0xff]
    %v38 = vmul.f32 %v35, 0.25
    %v39 = vmul.f32 %v36, 0.25
    %v40 = vmul.f32 %v37, 0.25
    %v41 = vld [vmem:[%s2] sm:$0xff]
    %v42 = vld [vmem:[%s2 + $0x8] sm:$0xff]
    %v43 = vld [vmem:[%s2 + $0x10] sm:$0xff]
    %44 = vmax.xlane.f32.xlu0 %v32
    %v45 = vpop.xlane.xlu0 %44
    %46 = vmax.xlane.f32.xlu0 %v33
    %v47 = vpop.xlane.xlu0 %46
    %48 = vmax.xlane.f32.xlu0 %v34
    %v49 = vpop.xlane.xlu0 %48
    %50 = vmax.xlane.f32.xlu0 %v38
    %v51 = vpop.xlane.xlu0 %50
    %52 = vmax.xlane.f32.xlu0 %v39
    %v53 = vpop.xlane.xlu0 %52
    %54 = vmax.xlane.f32.xlu0 %v40
    %v55 = vpop.xlane.xlu0 %54
    %v56 = vsub.f32 %v32, %v45
    %v57 = vsub.f32 %v33, %v47
    %v58 = vsub.f32 %v34, %v49
    %v59 = vmul.f32 %v56, 1.442695
    %v60 = vpow.pop %v59
    %v61 = vmul.f32 %v57, 1.442695
    %v62 = vpow.pop %v61
    %v63 = vmul.f32 %v58, 1.442695
    %v64 = vpow.pop %v63
    %v65 = vsub.f32 %v38, %v51
    %v66 = vsub.f32 %v39, %v53
    %v67 = vsub.f32 %v40, %v55
    %v68 = vmul.f32 %v65, 1.442695
    %v69 = vpow.pop %v68
    %v70 = vmul.f32 %v66, 1.442695
    %v71 = vpow.pop %v70
    %v72 = vmul.f32 %v67, 1.442695
    %v73 = vpow.pop %v72
    %74 = vadd.xlane.f32.xlu0 %v60
    %v75 = vpop.xlane.xlu0 %74
    %76 = vadd.xlane.f32.xlu0 %v62
    %v77 = vpop.xlane.xlu0 %76
    %78 = vadd.xlane.f32.xlu0 %v64
    %v79 = vpop.xlane.xlu0 %78
    %80 = vadd.xlane.f32.xlu0 %v69
    %v81 = vpop.xlane.xlu0 %80
    %82 = vadd.xlane.f32.xlu0 %v71
    %v83 = vpop.xlane.xlu0 %82
    %84 = vadd.xlane.f32.xlu0 %v73
    %v85 = vpop.xlane.xlu0 %84
    %v86 = vmul.f32 %v69, %v65
    %v87 = vmul.f32 %v71, %v66
    %v88 = vmul.f32 %v73, %v67
    %89 = vadd.xlane.f32.xlu0 %v86
    %v90 = vpop.xlane.xlu0 %89
    %91 = vadd.xlane.f32.xlu0 %v87
    %v92 = vpop.xlane.xlu0 %91
    %93 = vadd.xlane.f32.xlu0 %v88
    %v94 = vpop.xlane.xlu0 %93
    %v95 = vmul.f32 %v69, %v60
    %v96 = vmul.f32 %v71, %v62
    %v97 = vmul.f32 %v73, %v64
    %98 = vadd.xlane.f32.xlu0 %v95
    %v99 = vpop.xlane.xlu0 %98
    %100 = vadd.xlane.f32.xlu0 %v96
    %v101 = vpop.xlane.xlu0 %100
    %102 = vadd.xlane.f32.xlu0 %v97
    %v103 = vpop.xlane.xlu0 %102
    %v104 = vrcp.pop %v75
    %v105 = vmul.f32 %v99, %v104
    %v106 = vrcp.pop %v77
    %v107 = vmul.f32 %v101, %v106
    %v108 = vrcp.pop %v79
    %v109 = vmul.f32 %v103, %v108
    %v110 = vsub.f32 %v90, %v105
    %v111 = vsub.f32 %v92, %v107
    %v112 = vsub.f32 %v94, %v109
    %v113 = vrcp.pop %v81
    %v114 = vmul.f32 %v110, %v113
    %v115 = vrcp.pop %v83
    %v116 = vmul.f32 %v111, %v115
    %v117 = vrcp.pop %v85
    %v118 = vmul.f32 %v112, %v117
    %v119 = vlog2.pop %v81
    %v120 = vmul.f32 %v119, 0.6931472
    %v121 = vlog2.pop %v83
    %v122 = vmul.f32 %v121, 0.6931472
    %v123 = vlog2.pop %v85
    %v124 = vmul.f32 %v123, 0.6931472
    %v125 = vsub.f32 %v114, %v120
    %v126 = vsub.f32 %v116, %v122
    %v127 = vsub.f32 %v118, %v124
    %v128 = vmul.f32 %v60, %v60
    %v129 = vmul.f32 %v62, %v62
    %v130 = vmul.f32 %v64, %v64
    %v131 = vmul.f32 %v128, %v128
    %v132 = vmul.f32 %v129, %v129
    %v133 = vmul.f32 %v130, %v130
    %v134 = vmul.f32 %v45, 4.0
    %v135 = vmul.f32 %v47, 4.0
    %v136 = vmul.f32 %v49, 4.0
    %137 = vadd.xlane.f32.xlu0 %v131
    %v138 = vpop.xlane.xlu0 %137
    %139 = vadd.xlane.f32.xlu0 %v132
    %v140 = vpop.xlane.xlu0 %139
    %141 = vadd.xlane.f32.xlu0 %v133
    %v142 = vpop.xlane.xlu0 %141
    %v143 = vlog2.pop %v138
    %v144 = vmul.f32 %v143, 0.6931472
    %v145 = vlog2.pop %v140
    %v146 = vmul.f32 %v145, 0.6931472
    %v147 = vlog2.pop %v142
    %v148 = vmul.f32 %v147, 0.6931472
    %v149 = vadd.f32 %v134, %v144
    %v150 = vadd.f32 %v135, %v146
    %v151 = vadd.f32 %v136, %v148
    %v152 = vlaneseq
    %v153 = vand.u32 %v152, 127
    %154 = vset.pattern.permute.xlu0 0
    %155 = vperm.xlu0 %154, %v41
    %v156 = vpop.permute.xlu0 %155
    %157 = vset.pattern.permute.xlu0 0
    %158 = vperm.xlu0 %157, %v42
    %v159 = vpop.permute.xlu0 %158
    %160 = vset.pattern.permute.xlu0 0
    %161 = vperm.xlu0 %160, %v43
    %v162 = vpop.permute.xlu0 %161
    %vm163 = vcmp.eq.s32.totalorder %v153, %v156
    %vm164 = vcmp.eq.s32.totalorder %v153, %v159
    %vm165 = vcmp.eq.s32.totalorder %v153, %v162
    %v166 = vsel %vm163, %v32, 0.0
    %v167 = vsel %vm164, %v33, 0.0
    %v168 = vsel %vm165, %v34, 0.0
    %169 = vadd.xlane.f32.xlu0 %v166
    %v170 = vpop.xlane.xlu0 %169
    %171 = vadd.xlane.f32.xlu0 %v167
    %v172 = vpop.xlane.xlu0 %171
    %173 = vadd.xlane.f32.xlu0 %v168
    %v174 = vpop.xlane.xlu0 %173
    %v175 = vmul.f32 %v170, 4.0
    %v176 = vmul.f32 %v172, 4.0
    %v177 = vmul.f32 %v174, 4.0
    %v178 = vsub.f32 %v149, %v175
    %v179 = vsub.f32 %v150, %v176
    %v180 = vsub.f32 %v151, %v177
    %v181 = vlaneseq
    %v182 = vshrl.u32 %v181, 7
    %v183 = vadd.s32 %v182, 8
    %v184 = vadd.s32 %v182, 16
    %s185 = smul.u32 0, 24
    %v186 = vstv %s185
    %v187 = vadd.s32 %v186, %v182
    %v188 = vadd.s32 %v186, %v183
    %v189 = vadd.s32 %v186, %v184
    %vm190 = vcmp.lt.s32.totalorder %v187, 24
    %vm191 = vcmp.lt.s32.totalorder %v188, 24
    %vm192 = vcmp.lt.s32.totalorder %v189, 24
    %v193 = vsel %vm190, %v125, 0.0
    %v194 = vsel %vm191, %v126, 0.0
    %v195 = vsel %vm192, %v127, 0.0
    %vm196 = vcmask 7168
    %v197 = vsel %vm196, %v193, 0.0
    %v198 = vsel %vm196, %v194, 0.0
    %v199 = vadd.f32 %v197, %v198
    %v200 = vsel %vm196, %v195, 0.0
    %v201 = vadd.f32 %v199, %v200
    %202 = vadd.xlane.f32.xlu0 %v201
    %v203 = vpop.xlane.xlu0 %202
    %v204 = vrot.slane %v203, 4
    %v205 = vadd.f32 %v203, %v204
    %v206 = vrot.slane %v205, 2
    %v207 = vadd.f32 %v205, %v206
    %v208 = vrot.slane %v207, 1
    %v209 = vadd.f32 %v207, %v208
    %s210 = vtos %v209
    %v211 = vsel %vm190, %v178, 0.0
    %v212 = vsel %vm191, %v179, 0.0
    %v213 = vsel %vm192, %v180, 0.0
    %v214 = vsel %vm196, %v211, 0.0
    %v215 = vsel %vm196, %v212, 0.0
    %v216 = vadd.f32 %v214, %v215
    %v217 = vsel %vm196, %v213, 0.0
    %v218 = vadd.f32 %v216, %v217
    %219 = vadd.xlane.f32.xlu0 %v218
    %v220 = vpop.xlane.xlu0 %219
    %v221 = vrot.slane %v220, 4
    %v222 = vadd.f32 %v220, %v221
    %v223 = vrot.slane %v222, 2
    %v224 = vadd.f32 %v222, %v223
    %v225 = vrot.slane %v224, 1
    %v226 = vadd.f32 %v224, %v225
    %s227 = vtos %v226
    %vm228 = vcmp.eq.s32.totalorder %v182, 0
    %v229 = vstv %s210
    %v230 = vstv %s227
    %v231 = vsel %vm228, %v229, %v230
    %232 = vst [vmem:[#allocation5] sm:$0x3] %v231
    // Predicated region
    $region18: #{tpu_custom_call.1} parent=1 // pred_check
      _
    $region19: #{tpu_custom_call.1} parent=1 // pred_check_branch
      %234 = sbr.rel (0) target = $region21
    $region20: #{tpu_custom_call.1} parent=1 // pred_region
      %s236 = ssub.s32 32, 32
      %237 = vsyncadd [#allocation4], %s236
      %s239 = sshll.u32 [#allocation5], 4
      %s240 = int_to_ptr.vmem [resolvable:$true] %s239
      %242 = dma.vmem_to_hbm [thread:$0]  %s240, 32, %s3, [#allocation4]
    $region21: #{tpu_custom_call.1} parent=1 // pred_fallthru
      _
    // Predicated region
    $region22: #{tpu_custom_call.1} parent=1 // pred_check
      _
    $region23: #{tpu_custom_call.1} parent=1 // pred_check_branch
      %244 = sbr.rel (0) target = $region25
    $region24: #{tpu_custom_call.1} parent=1 // pred_region
      %245 = dma.done [#allocation4], 32
    $region25: #{tpu_custom_call.1} parent=1 // pred_fallthru
      _
    %246 = vsyncpa [#allocation3], 1
    %247 = vsyncpa [#allocation4], 1

</llo_original>
